<compile_context>
chip_gen: v7x
topology: tpu7x:2x2x1
jax: 0.10.0
libtpu: 0.0.40
codegen_flags: <defaults>
</compile_context>

<pallas_src>
import functools

import jax
import jax.numpy as jnp
from jax.experimental import pallas as pl
from jax.experimental.pallas import tpu as pltpu


def _mlp_kernel(x_ref, w_ref, b_ref, g_ref, beta_ref, o_ref, acc_ref, *, eps, o_real):
    # x_ref:    (TM, TK)  activation rows for this (row-block, k-block)
    # w_ref:    (TK, OP)  weight slab (pre-transposed, lane-padded, bf16)
    # b_ref:    (1, OP)   linear bias     (f32, zero-padded lanes)
    # g_ref:    (1, OP)   layernorm gamma (f32, zero-padded lanes)
    # beta_ref: (1, OP)   layernorm beta  (f32, zero-padded lanes)
    # o_ref:    (TM, OP)  output rows
    # acc_ref:  (TM, OP)  f32 matmul accumulator (scratch, resident over k)
    k = pl.program_id(1)

    @pl.when(k == 0)
    def _():
        acc_ref[...] = jnp.zeros_like(acc_ref)

    # MXU dot with f32 accumulation.
    acc_ref[...] += jnp.dot(
        x_ref[...], w_ref[...], preferred_element_type=jnp.float32
    )

    @pl.when(k == pl.num_programs(1) - 1)
    def _():
        y = acc_ref[...] + b_ref[...]
        # One-pass LayerNorm statistics over the lane axis.  Padded lanes of y
        # are exactly zero (zero weight columns + zero bias), so the sums only
        # see the real O lanes; divide by the true O, not the padded width.
        inv_o = 1.0 / o_real
        s1 = jnp.sum(y, axis=-1, keepdims=True)
        s2 = jnp.sum(y * y, axis=-1, keepdims=True)
        mean = s1 * inv_o
        var = jnp.maximum(s2 * inv_o - mean * mean, 0.0)
        inv = jax.lax.rsqrt(var + eps)                      # EUP slot
        out = (y - mean) * inv * g_ref[...] + beta_ref[...]
        o_ref[...] = jnp.maximum(out, 0.0).astype(o_ref.dtype)


def _round_up(n, m):
    return ((n + m - 1) // m) * m


def _pick_tk(H, O_pad, w_itemsize):
    """Reduction-axis tile: whole H if the double-buffered weight slab is small,
    otherwise the largest 128-multiple divisor of H that fits the budget."""
    budget = 24 * 1024 * 1024  # keeps the working set well under 64 MiB (v7x per-TC)
    if 2 * H * O_pad * w_itemsize <= budget:
        return H
    for tk in (2048, 1024, 512, 256, 128):
        if H % tk == 0 and 2 * tk * O_pad * w_itemsize <= budget:
            return tk
    # TODO(synk): for huge H with no 128-multiple divisor, zero-pad H wrapper-side.
    return H


def mlp_forward(x, weight, bias, ln_weight, ln_bias, *, eps=1e-5,
                block_rows=256, matmul_dtype=jnp.bfloat16):
    """x: (..., H); weight: (O, H); bias/ln_weight/ln_bias: (O,) -> (..., O)."""
    *lead, H = x.shape
    O = weight.shape[0]
    O_pad = _round_up(O, 128)          # lane-dense output / param blocks
    out_dtype = x.dtype
    out_itemsize = jnp.dtype(out_dtype).itemsize
    mm_itemsize = jnp.dtype(matmul_dtype).itemsize

    x2 = x.reshape(-1, H).astype(matmul_dtype)
    n_rows = x2.shape[0]

    # Rows per grid step: >= 8 (one sublane tile), multiple of 8, capped to the
    # rounded-up row count.  No jnp.pad of the activations: the grid uses cdiv
    # and Pallas drops the out-of-bounds writes of the ragged last block.
    br = max(8, min(block_rows, _round_up(n_rows, 8)))
    while br > 8 and br * O_pad * (4 + 2 * out_itemsize) > 24 * 1024 * 1024:
        br = max(8, _round_up(br // 2, 8))
    n_row_blocks = pl.cdiv(n_rows, br)

    # Wrapper-side layout plumbing: transpose + bf16-cast the weight, zero-pad
    # weight / bias / gamma / beta lanes up to O_pad.  No in-kernel transposes.
    w_t = weight.T.astype(matmul_dtype)            # (H, O)
    b_p = bias.astype(jnp.float32)
    g_p = ln_weight.astype(jnp.float32)
    be_p = ln_bias.astype(jnp.float32)
    if O_pad != O:
        w_t = jnp.pad(w_t, ((0, 0), (0, O_pad - O)))
        b_p = jnp.pad(b_p, (0, O_pad - O))
        g_p = jnp.pad(g_p, (0, O_pad - O))
        be_p = jnp.pad(be_p, (0, O_pad - O))
    b_p = b_p.reshape(1, O_pad)
    g_p = g_p.reshape(1, O_pad)
    be_p = be_p.reshape(1, O_pad)

    tk = _pick_tk(H, O_pad, mm_itemsize)
    n_k = pl.cdiv(H, tk)               # tk divides H (or equals it) -> exact

    # Explicit scoped-VMEM limit: the default (16/32 MiB) is far below physical.
    # Size it to the double-buffered working set + headroom, capped at v7x's
    # 64 MiB per-TC physical VMEM, and never below the 32 MiB default.
    need = (2 * (br * tk + tk * O_pad) * mm_itemsize       # x / W streams
            + 2 * br * O_pad * out_itemsize                # out stream
            + 2 * 3 * O_pad * 4                            # bias/gamma/beta
            + br * O_pad * 4)                              # f32 accumulator
    vmem_limit = int(min(64 * 1024 * 1024,
                         max(32 * 1024 * 1024, int(need * 1.5) + (4 << 20))))

    cost = pl.CostEstimate(
        flops=2 * n_rows * H * O_pad + 8 * n_rows * O_pad,
        transcendentals=n_rows,                            # one rsqrt per row
        bytes_accessed=(n_rows * H * mm_itemsize
                        + n_row_blocks * H * O_pad * mm_itemsize
                        + n_rows * O_pad * out_itemsize
                        + 3 * O_pad * 4),
    )

    out = pl.pallas_call(
        functools.partial(_mlp_kernel, eps=eps, o_real=float(O)),
        out_shape=jax.ShapeDtypeStruct((n_rows, O_pad), out_dtype),
        grid_spec=pltpu.PrefetchScalarGridSpec(
            num_scalar_prefetch=0,
            grid=(n_row_blocks, n_k),                      # reduction axis last
            in_specs=[
                pl.BlockSpec((br, tk), lambda i, k: (i, k)),      # x rows
                pl.BlockSpec((tk, O_pad), lambda i, k: (k, 0)),   # W^T slab
                pl.BlockSpec((1, O_pad), lambda i, k: (0, 0)),    # bias
                pl.BlockSpec((1, O_pad), lambda i, k: (0, 0)),    # gamma
                pl.BlockSpec((1, O_pad), lambda i, k: (0, 0)),    # beta
            ],
            out_specs=pl.BlockSpec((br, O_pad), lambda i, k: (i, 0)),
            scratch_shapes=[pltpu.VMEM((br, O_pad), jnp.float32)],
        ),
        compiler_params=pltpu.CompilerParams(
            dimension_semantics=("parallel", "arbitrary"),
            vmem_limit_bytes=vmem_limit,
        ),
        cost_estimate=cost,
    )(x2, w_t, b_p, g_p, be_p)

    if O_pad != O:
        out = out[:, :O]
    return out.reshape(*lead, O)


def reference_mlp(x, weight, bias, ln_weight, ln_bias, eps=1e-5):
    """Pure-JAX reference mirroring the PyTorch forward."""
    y = jnp.einsum("...h,oh->...o", x, weight) + bias
    u = jnp.mean(y, axis=-1, keepdims=True)
    s = jnp.mean((y - u) ** 2, axis=-1, keepdims=True)
    y = (y - u) / jnp.sqrt(s + eps)
    y = ln_weight * y + ln_bias
    return jnp.maximum(y, 0.0)


if __name__ == "__main__":
    key = jax.random.PRNGKey(0)
    kx, kw, kb, kg, kbe = jax.random.split(key, 5)

    B, S, H = 2, 8, 32          # batch, seq, hidden_size
    O = H                       # out_features defaults to hidden_size

    x = jax.random.normal(kx, (B, S, H), dtype=jnp.float32)

    # nn.Linear(H, O) default init: uniform(-1/sqrt(H), 1/sqrt(H))
    bound = 1.0 / (H ** 0.5)
    weight = jax.random.uniform(kw, (O, H), minval=-bound, maxval=bound,
                                dtype=jnp.float32)
    bias = jax.random.uniform(kb, (O,), minval=-bound, maxval=bound,
                              dtype=jnp.float32)
    # LayerNorm params (init is ones/zeros; perturb slightly to exercise them)
    ln_weight = jnp.ones((O,), jnp.float32) + 0.05 * jax.random.normal(kg, (O,))
    ln_bias = jnp.zeros((O,), jnp.float32) + 0.05 * jax.random.normal(kbe, (O,))

    out = mlp_forward(x, weight, bias, ln_weight, ln_bias)
    out = jax.block_until_ready(out)
    assert out.shape == (B, S, O), out.shape

    # Semantic check vs. the pure-f32 reference (kernel matmul runs in bf16).
    ref_f32 = reference_mlp(x, weight, bias, ln_weight, ln_bias)
    assert jnp.allclose(out, ref_f32, atol=5e-2, rtol=5e-2), "mismatch vs f32 reference"

    # Tighter check vs. a reference fed the same bf16-rounded matmul operands.
    x_r = x.astype(jnp.bfloat16).astype(jnp.float32)
    w_r = weight.astype(jnp.bfloat16).astype(jnp.float32)
    ref_bf16 = reference_mlp(x_r, w_r, bias, ln_weight, ln_bias)
    assert jnp.allclose(out, ref_bf16, atol=5e-3, rtol=5e-3), "mismatch vs bf16 reference"

    print("KERNEL_OK")
</pallas_src>

<mosaic_0001>
module attributes {stable_mosaic.version = 11 : i64} {
  func.func @_mlp_kernel(%arg0: i32, %arg1: i32, %arg2: memref<16x32xbf16, #tpu.memory_space<vmem>>, %arg3: memref<32x128xbf16, #tpu.memory_space<vmem>>, %arg4: memref<1x128xf32, #tpu.memory_space<vmem>>, %arg5: memref<1x128xf32, #tpu.memory_space<vmem>>, %arg6: memref<1x128xf32, #tpu.memory_space<vmem>>, %arg7: memref<16x128xf32, #tpu.memory_space<vmem>>, %arg8: memref<16x128xf32, #tpu.memory_space<vmem>>) attributes {dimension_semantics = [#tpu.dimension_semantics<parallel>, #tpu.dimension_semantics<arbitrary>], iteration_bounds = array<i64: 1, 1>, scalar_prefetch = 0 : i64, scratch_operands = 1 : i64, tpu.core_type = #tpu.core_type<tc>, window_params = [{transform_indices = @transform_0, window_bounds = array<i64: 16, 32>}, {transform_indices = @transform_1, window_bounds = array<i64: 32, 128>}, {pipeline_mode = #tpu.pipeline_mode<synchronous>, transform_indices = @transform_2, window_bounds = array<i64: 1, 128>}, {pipeline_mode = #tpu.pipeline_mode<synchronous>, transform_indices = @transform_3, window_bounds = array<i64: 1, 128>}, {pipeline_mode = #tpu.pipeline_mode<synchronous>, transform_indices = @transform_4, window_bounds = array<i64: 1, 128>}, {transform_indices = @transform_5, window_bounds = array<i64: 16, 128>}]} {
    %c0_i32 = arith.constant 0 : i32
    %0 = arith.cmpi eq, %arg1, %c0_i32 : i32
    %1 = arith.extui %0 : i1 to i32
    %c0_i32_0 = arith.constant 0 : i32
    %2 = arith.cmpi ne, %1, %c0_i32_0 : i32
    scf.if %2 {
      %cst_10 = arith.constant 0.000000e+00 : f32
      %12 = vector.broadcast %cst_10 : f32 to vector<16x128xf32>
      %c0_11 = arith.constant 0 : index
      %c0_12 = arith.constant 0 : index
      %13 = vector.load %arg8[%c0_11, %c0_12] : memref<16x128xf32, #tpu.memory_space<vmem>>, vector<16x128xf32>
      tpu.vector_store %arg8[%c0_11, %c0_12], %12 {strides = array<i32>} : memref<16x128xf32, #tpu.memory_space<vmem>>, vector<16x128xf32>,
    } else {
    }
    %c0 = arith.constant 0 : index
    %c0_1 = arith.constant 0 : index
    %3 = vector.load %arg8[%c0, %c0_1] : memref<16x128xf32, #tpu.memory_space<vmem>>, vector<16x128xf32>
    %c0_2 = arith.constant 0 : index
    %c0_3 = arith.constant 0 : index
    %4 = vector.load %arg2[%c0_2, %c0_3] : memref<16x32xbf16, #tpu.memory_space<vmem>>, vector<16x32xbf16>
    %c0_4 = arith.constant 0 : index
    %c0_5 = arith.constant 0 : index
    %5 = vector.load %arg3[%c0_4, %c0_5] : memref<32x128xbf16, #tpu.memory_space<vmem>>, vector<32x128xbf16>
    %cst = arith.constant dense<0.000000e+00> : vector<16x128xf32>
    %6 = tpu.matmul %4, %5, %cst {dimension_numbers = #tpu.dot_dimension_numbers<[1], [0], [0], [1], [0, 0, 1, 1], [], []>} : vector<16x32xbf16>, vector<32x128xbf16>, vector<16x128xf32> -> vector<16x128xf32>
    %7 = arith.addf %3, %6 : vector<16x128xf32>
    %c0_6 = arith.constant 0 : index
    %c0_7 = arith.constant 0 : index
    %8 = vector.load %arg8[%c0_6, %c0_7] : memref<16x128xf32, #tpu.memory_space<vmem>>, vector<16x128xf32>
    tpu.vector_store %arg8[%c0_6, %c0_7], %7 {strides = array<i32>} : memref<16x128xf32, #tpu.memory_space<vmem>>, vector<16x128xf32>,
    %c0_i32_8 = arith.constant 0 : i32
    %9 = arith.cmpi eq, %arg1, %c0_i32_8 : i32
    %10 = arith.extui %9 : i1 to i32
    %c0_i32_9 = arith.constant 0 : i32
    %11 = arith.cmpi ne, %10, %c0_i32_9 : i32
    scf.if %11 {
      %c0_10 = arith.constant 0 : index
      %c0_11 = arith.constant 0 : index
      %12 = vector.load %arg8[%c0_10, %c0_11] : memref<16x128xf32, #tpu.memory_space<vmem>>, vector<16x128xf32>
      %c0_12 = arith.constant 0 : index
      %c0_13 = arith.constant 0 : index
      %13 = vector.load %arg4[%c0_12, %c0_13] : memref<1x128xf32, #tpu.memory_space<vmem>>, vector<1x128xf32>
      %14 = vector.broadcast %13 : vector<1x128xf32> to vector<16x128xf32>
      %15 = arith.addf %12, %14 : vector<16x128xf32>
      %cst_14 = arith.constant dense<0.000000e+00> : vector<16xf32>
      %16 = vector.multi_reduction <add>, %15, %cst_14 [1] : vector<16x128xf32> to vector<16xf32>
      %17 = vector.shape_cast %16 : vector<16xf32> to vector<16x1xf32>
      %18 = arith.mulf %15, %15 : vector<16x128xf32>
      %cst_15 = arith.constant dense<0.000000e+00> : vector<16xf32>
      %19 = vector.multi_reduction <add>, %18, %cst_15 [1] : vector<16x128xf32> to vector<16xf32>
      %20 = vector.shape_cast %19 : vector<16xf32> to vector<16x1xf32>
      %cst_16 = arith.constant 3.125000e-02 : f32
      %21 = vector.broadcast %cst_16 : f32 to vector<16x1xf32>
      %22 = arith.mulf %17, %21 : vector<16x1xf32>
      %cst_17 = arith.constant 3.125000e-02 : f32
      %23 = vector.broadcast %cst_17 : f32 to vector<16x1xf32>
      %24 = arith.mulf %20, %23 : vector<16x1xf32>
      %25 = arith.mulf %22, %22 : vector<16x1xf32>
      %26 = arith.subf %24, %25 : vector<16x1xf32>
      %cst_18 = arith.constant 0.000000e+00 : f32
      %27 = vector.broadcast %cst_18 : f32 to vector<16x1xf32>
      %28 = arith.maximumf %26, %27 : vector<16x1xf32>
      %cst_19 = arith.constant 9.99999974E-6 : f32
      %29 = vector.broadcast %cst_19 : f32 to vector<16x1xf32>
      %30 = arith.addf %28, %29 : vector<16x1xf32>
      %31 = math.rsqrt %30 : vector<16x1xf32>
      %32 = vector.broadcast %22 : vector<16x1xf32> to vector<16x128xf32>
      %33 = arith.subf %15, %32 : vector<16x128xf32>
      %34 = vector.broadcast %31 : vector<16x1xf32> to vector<16x128xf32>
      %35 = arith.mulf %33, %34 : vector<16x128xf32>
      %c0_20 = arith.constant 0 : index
      %c0_21 = arith.constant 0 : index
      %36 = vector.load %arg5[%c0_20, %c0_21] : memref<1x128xf32, #tpu.memory_space<vmem>>, vector<1x128xf32>
      %37 = vector.broadcast %36 : vector<1x128xf32> to vector<16x128xf32>
      %38 = arith.mulf %35, %37 : vector<16x128xf32>
      %c0_22 = arith.constant 0 : index
      %c0_23 = arith.constant 0 : index
      %39 = vector.load %arg6[%c0_22, %c0_23] : memref<1x128xf32, #tpu.memory_space<vmem>>, vector<1x128xf32>
      %40 = vector.broadcast %39 : vector<1x128xf32> to vector<16x128xf32>
      %41 = arith.addf %38, %40 : vector<16x128xf32>
      %cst_24 = arith.constant 0.000000e+00 : f32
      %42 = vector.broadcast %cst_24 : f32 to vector<16x128xf32>
      %43 = arith.maximumf %41, %42 : vector<16x128xf32>
      %c0_25 = arith.constant 0 : index
      %c0_26 = arith.constant 0 : index
      %44 = vector.load %arg7[%c0_25, %c0_26] : memref<16x128xf32, #tpu.memory_space<vmem>>, vector<16x128xf32>
      tpu.vector_store %arg7[%c0_25, %c0_26], %43 {strides = array<i32>} : memref<16x128xf32, #tpu.memory_space<vmem>>, vector<16x128xf32>,
    } else {
    }
    return
  }
  func.func @transform_0(%arg0: i32, %arg1: i32) -> (i32, i32) {
    %c0_i32 = arith.constant 0 : i32
    return %arg0, %arg1 : i32, i32
  }
  func.func @transform_1(%arg0: i32, %arg1: i32) -> (i32, i32) {
    %c0_i32 = arith.constant 0 : i32
    %c0_i32_0 = arith.constant 0 : i32
    return %arg1, %c0_i32 : i32, i32
  }
  func.func @transform_2(%arg0: i32, %arg1: i32) -> (i32, i32) {
    %c0_i32 = arith.constant 0 : i32
    %c0_i32_0 = arith.constant 0 : i32
    %c0_i32_1 = arith.constant 0 : i32
    return %c0_i32, %c0_i32_0 : i32, i32
  }
  func.func @transform_3(%arg0: i32, %arg1: i32) -> (i32, i32) {
    %c0_i32 = arith.constant 0 : i32
    %c0_i32_0 = arith.constant 0 : i32
    %c0_i32_1 = arith.constant 0 : i32
    return %c0_i32, %c0_i32_0 : i32, i32
  }
  func.func @transform_4(%arg0: i32, %arg1: i32) -> (i32, i32) {
    %c0_i32 = arith.constant 0 : i32
    %c0_i32_0 = arith.constant 0 : i32
    %c0_i32_1 = arith.constant 0 : i32
    return %c0_i32, %c0_i32_0 : i32, i32
  }
  func.func @transform_5(%arg0: i32, %arg1: i32) -> (i32, i32) {
    %c0_i32 = arith.constant 0 : i32
    %c0_i32_0 = arith.constant 0 : i32
    return %arg0, %c0_i32 : i32, i32
  }
}

</mosaic_0001>

<llo_original>
// kernel: tpu_custom_call.1
$region0: #{tpu_custom_call.1}
  #allocation0 [shape = 'u32[]', space=smem, size = 0x4, offset = 0x4, fixed_abs, tag = 'smem constant byte address 0x4 - core index']
  #allocation1 [shape = 'u32[144,128]{1,0:T(1,128)}', space=vmem, size = 0x12000, scoped, tag = 'internal scratch']
  #allocation2 [shape = 'f32[16,128]{1,0:T(8,128)}', space=vmem, size = 0x2000, scoped, tag = 'scratch operand']
  %s0 = inlined_call_operand.hbm [shape: bf16[16,32], index: 0, kind: input, shape index: {}]
  %s1 = inlined_call_operand.hbm [shape: bf16[32,128], index: 1, kind: input, shape index: {}]
  %s2 = inlined_call_operand.vmem [shape: f32[1,128], index: 2, kind: input, shape index: {}]
  %s3 = inlined_call_operand.vmem [shape: f32[1,128], index: 3, kind: input, shape index: {}]
  %s4 = inlined_call_operand.vmem [shape: f32[1,128], index: 4, kind: input, shape index: {}]
  %s5 = inlined_call_operand.hbm [shape: f32[16,128], index: 5, kind: output, shape index: {}]
  %s6 = sld [smem:[#allocation0]]
  $region46: #{tpu_custom_call.1} parent=0
    _
  %s8 = ssub.s32 1, %s6
  %s9 = scalar_select 0, %s8, %s6
  $region1: #{tpu_custom_call.1} parent=0
    #allocation3 [shape = 'u8[4096]{0}', space=vmem, size = 0x1000, scoped, tag = 'input window, operand 0, single buffered']
    #allocation4 [shape = 's32[1]{0}', space=sflag, size = 0x4, scoped, tag = 'scoped memory for tpu_custom_call.1']
    #allocation5 [shape = 's32[1]{0}', space=sflag, size = 0x4, scoped, tag = 'scoped memory for tpu_custom_call.1']
    #allocation6 [shape = 'u8[8192]{0}', space=vmem, size = 0x2000, scoped, tag = 'input window, operand 1, single buffered']
    #allocation7 [shape = 's32[1]{0}', space=sflag, size = 0x4, scoped, tag = 'scoped memory for tpu_custom_call.1']
    #allocation8 [shape = 'u8[8192]{0}', space=vmem, size = 0x2000, scoped, tag = 'output window, operand 0, single buffered']
    %10 = vsyncpa [#allocation4], 0
    %11 = vsyncpa [#allocation7], 0
    %12 = vsyncpa [#allocation5], 0
    // Predicated region
    $region2: #{tpu_custom_call.1} parent=1 // pred_check
      _
    $region3: #{tpu_custom_call.1} parent=1 // pred_check_branch
      %14 = sbr.rel (0) target = $region5
    $region4: #{tpu_custom_call.1} parent=1 // pred_region
      %s16 = ssub.s32 128, 128
      %17 = vsyncadd [#allocation4], %s16
      %s18 = sshll.u32 [#allocation3], 4
      %s19 = int_to_ptr.vmem [resolvable:$true] %s18
      %24 = dma.hbm_to_vmem [thread:$0]  %s0, 128, %s19, [#allocation4], 64, 64, 4
    $region5: #{tpu_custom_call.1} parent=1 // pred_fallthru
      _
    // Predicated region
    $region6: #{tpu_custom_call.1} parent=1 // pred_check
      _
    $region7: #{tpu_custom_call.1} parent=1 // pred_check_branch
      %26 = sbr.rel (0) target = $region9
    $region8: #{tpu_custom_call.1} parent=1 // pred_region
      %s28 = ssub.s32 256, 256
      %29 = vsyncadd [#allocation7], %s28
      %s30 = sshll.u32 [#allocation6], 4
      %s31 = int_to_ptr.vmem [resolvable:$true] %s30
      %36 = dma.hbm_to_vmem [thread:$0]  %s1, 256, %s31, [#allocation7], 64, 64, 4
    $region9: #{tpu_custom_call.1} parent=1 // pred_fallthru
      _
    // Predicated region
    $region10: #{tpu_custom_call.1} parent=1 // pred_check
      _
    $region11: #{tpu_custom_call.1} parent=1 // pred_check_branch
      %38 = sbr.rel (0) target = $region13
    $region12: #{tpu_custom_call.1} parent=1 // pred_region
      _
    $region13: #{tpu_custom_call.1} parent=1 // pred_fallthru
      _
    // Predicated region
    $region14: #{tpu_custom_call.1} parent=1 // pred_check
      _
    $region15: #{tpu_custom_call.1} parent=1 // pred_check_branch
      %40 = sbr.rel (0) target = $region17
    $region16: #{tpu_custom_call.1} parent=1 // pred_region
      _
    $region17: #{tpu_custom_call.1} parent=1 // pred_fallthru
      _
    // Predicated region
    $region18: #{tpu_custom_call.1} parent=1 // pred_check
      _
    $region19: #{tpu_custom_call.1} parent=1 // pred_check_branch
      %42 = sbr.rel (0) target = $region21
    $region20: #{tpu_custom_call.1} parent=1 // pred_region
      _
    $region21: #{tpu_custom_call.1} parent=1 // pred_fallthru
      _
    // Predicated region
    $region22: #{tpu_custom_call.1} parent=1 // pred_check
      _
    $region23: #{tpu_custom_call.1} parent=1 // pred_check_branch
      %44 = sbr.rel (0) target = $region25
    $region24: #{tpu_custom_call.1} parent=1 // pred_region
      %45 = dma.done [#allocation4], 128
    $region25: #{tpu_custom_call.1} parent=1 // pred_fallthru
      _
    // Predicated region
    $region26: #{tpu_custom_call.1} parent=1 // pred_check
      _
    $region27: #{tpu_custom_call.1} parent=1 // pred_check_branch
      %47 = sbr.rel (0) target = $region29
    $region28: #{tpu_custom_call.1} parent=1 // pred_region
      %48 = dma.done [#allocation7], 256
    $region29: #{tpu_custom_call.1} parent=1 // pred_fallthru
      _
    %p50 = scmp.eq.s32.totalorder 0, 0
    // Predicated region
    $region30: #{tpu_custom_call.1} parent=1 // pred_check
      %p51 = pneg %p50
    $region31: #{tpu_custom_call.1} parent=1 // pred_check_branch
      %53 = sbr.rel (%p51) target = $region33
    $region32: #{tpu_custom_call.1} parent=1 // pred_region
      %54 = vst [vmem:[#allocation2] sm:$0xff] 0.0
      %55 = vst [vmem:[#allocation2 + $0x8] sm:$0xff] 0.0
    $region33: #{tpu_custom_call.1} parent=1 // pred_fallthru
      _
    %v56 = vld [vmem:[#allocation2] sm:$0xff]
    %v57 = vld [vmem:[#allocation2 + $0x8] sm:$0xff]
    %v58 = vld [vmem:[#allocation3] sm:$0xf]
    %v59 = vld [vmem:[#allocation3 + $0x4] sm:$0xf]
    %v60 = vld [vmem:[#allocation6] sm:$0xf]
    %v61 = vld [vmem:[#allocation6 + $0x4] sm:$0xf]
    %v62 = vld [vmem:[#allocation6 + $0x8] sm:$0xf]
    %v63 = vld [vmem:[#allocation6 + $0xc] sm:$0xf]
    %v66 = vunpack.c.l.b16 %v58
    %v67 = vunpack.c.l.b16 %v59
    %v68 = vpack.c.b16 %v67, %v66
    %v73 = vunpack.c.l.b16 %v60
    %v74 = vunpack.c.l.b16 %v61
    %v75 = vunpack.c.l.b16 %v62
    %v76 = vunpack.c.l.b16 %v63
    %v77 = vpack.c.b16 %v74, %v73
    %v78 = vpack.c.b16 %v76, %v75
    %vm81 = vcmask 261120
    %v83 = vsel %vm81, %v68, 0
    %85 = vmatprep.subr.bf16.mxu0 0
    %86 = vmatpush1.bf16.msra.mxu0 %v77
    %87 = vmatprep.subr.bf16.mxu0 0
    %88 = vmatpush1.bf16.msra.mxu0 %v78
    %89 = vmatprep.subr.bf16.mxu0 0
    %90 = vmatpush1.bf16.msra.mxu0 0
    %91 = vmatprep.subr.bf16.mxu0 0
    %92 = vmatpush1.bf16.msra.mxu0 0
    %93 = vmatprep.subr.bf16.mxu0 0
    %94 = vmatpush1.bf16.msra.mxu0 0
    %95 = vmatprep.subr.bf16.mxu0 0
    %96 = vmatpush1.bf16.msra.mxu0 0
    %97 = vmatprep.subr.bf16.mxu0 0
    %98 = vmatpush1.bf16.msra.mxu0 0
    %99 = vmatprep.subr.bf16.mxu0 0
    %100 = vmatpush1.bf16.msra.mxu0 0
    %101 = vmatprep.subr.bf16.mxu0 0
    %102 = vmatpush1.bf16.msra.mxu0 0
    %103 = vmatprep.subr.bf16.mxu0 0
    %104 = vmatpush1.bf16.msra.mxu0 0
    %105 = vmatprep.subr.bf16.mxu0 0
    %106 = vmatpush1.bf16.msra.mxu0 0
    %107 = vmatprep.subr.bf16.mxu0 0
    %108 = vmatpush1.bf16.msra.mxu0 0
    %109 = vmatprep.subr.bf16.mxu0 0
    %110 = vmatpush1.bf16.msra.mxu0 0
    %111 = vmatprep.subr.bf16.mxu0 0
    %112 = vmatpush1.bf16.msra.mxu0 0
    %113 = vmatprep.subr.bf16.mxu0 0
    %114 = vmatpush1.bf16.msra.mxu0 0
    %115 = vmatprep.subr.bf16.mxu0 0
    %116 = vmatpush1.bf16.msra.mxu0 0
    %117 = vmatprep.mubr.bf16.mxu0 0
    %118 = vmatmul.mubr.bf16.gmra.mrb[0].mxu0 %v83
    %v119 = vpop.f32.mrb[0].mxu0
    %v120 = vadd.f32 0.0, %v119
    %v121 = vpop.f32.mrb[0].mxu0
    %v122 = vpop.f32.mrb[0].mxu0
    %v123 = vadd.f32 0.0, %v122
    %v124 = vpop.f32.mrb[0].mxu0
    %125 = vdwg.mxu0
    %v126 = vadd.f32 %v56, %v120
    %v127 = vadd.f32 %v57, %v123
    %128 = vst [vmem:[#allocation2] sm:$0xff] %v126
    %129 = vst [vmem:[#allocation2 + $0x8] sm:$0xff] %v127
    // Predicated region
    $region34: #{tpu_custom_call.1} parent=1 // pred_check
      %p130 = pneg %p50
    $region35: #{tpu_custom_call.1} parent=1 // pred_check_branch
      %132 = sbr.rel (%p130) target = $region37
    $region36: #{tpu_custom_call.1} parent=1 // pred_region
      %v133 = vld [vmem:[#allocation2] sm:$0xff]
      %v134 = vld [vmem:[#allocation2 + $0x8] sm:$0xff]
      %v135 = vld [vmem:[%s2] sm:$0x1]
      %v137 = vlaneseq
      %v138 = vshrl.u32 %v137, 7
      %v139 = vsub.s32 0, %v138
      %v140 = vrot.slane %v135, %v139
      %v142 = vadd.f32 %v133, %v140
      %v143 = vadd.f32 %v134, %v140
      %144 = vadd.xlane.f32.xlu0 %v142
      %v145 = vpop.xlane.xlu0 %144
      %146 = vadd.xlane.f32.xlu0 %v143
      %v147 = vpop.xlane.xlu0 %146
      %v148 = vmul.f32 %v142, %v142
      %v149 = vmul.f32 %v143, %v143
      %150 = vadd.xlane.f32.xlu0 %v148
      %v151 = vpop.xlane.xlu0 %150
      %152 = vadd.xlane.f32.xlu0 %v149
      %v153 = vpop.xlane.xlu0 %152
      %v154 = vmul.f32 %v145, 0.03125
      %v155 = vmul.f32 %v147, 0.03125
      %v156 = vmul.f32 %v151, 0.03125
      %v157 = vmul.f32 %v153, 0.03125
      %v158 = vmul.f32 %v154, %v154
      %v159 = vmul.f32 %v155, %v155
      %v160 = vsub.f32 %v156, %v158
      %v161 = vsub.f32 %v157, %v159
      %v162 = vmax.f32 %v160, 0.0
      %v163 = vmax.f32 %v161, 0.0
      %v164 = vadd.f32 %v162, 1e-05
      %v165 = vadd.f32 %v163, 1e-05
      %v166 = vrsqrt.pop %v164
      %v167 = vrsqrt.pop %v165
      %v168 = vsub.f32 %v142, %v154
      %v169 = vsub.f32 %v143, %v155
      %v170 = vmul.f32 %v168, %v166
      %v171 = vmul.f32 %v169, %v167
      %v172 = vld [vmem:[%s3] sm:$0x1]
      %v174 = vlaneseq
      %v175 = vshrl.u32 %v174, 7
      %v176 = vsub.s32 0, %v175
      %v177 = vrot.slane %v172, %v176
      %v179 = vmul.f32 %v170, %v177
      %v180 = vmul.f32 %v171, %v177
      %v181 = vld [vmem:[%s4] sm:$0x1]
      %v183 = vlaneseq
      %v184 = vshrl.u32 %v183, 7
      %v185 = vsub.s32 0, %v184
      %v186 = vrot.slane %v181, %v185
      %v188 = vadd.f32 %v179, %v186
      %v189 = vadd.f32 %v180, %v186
      %v190 = vmax.f32 %v188, 0.0
      %v191 = vmax.f32 %v189, 0.0
      %192 = vst [vmem:[#allocation8] sm:$0xff] %v190
      %193 = vst [vmem:[#allocation8 + $0x8] sm:$0xff] %v191
    $region37: #{tpu_custom_call.1} parent=1 // pred_fallthru
      _
    // Predicated region
    $region38: #{tpu_custom_call.1} parent=1 // pred_check
      _
    $region39: #{tpu_custom_call.1} parent=1 // pred_check_branch
      %195 = sbr.rel (0) target = $region41
    $region40: #{tpu_custom_call.1} parent=1 // pred_region
      %s197 = ssub.s32 256, 256
      %198 = vsyncadd [#allocation5], %s197
      %s199 = sshll.u32 [#allocation8], 4
      %s200 = int_to_ptr.vmem [resolvable:$true] %s199
      %205 = dma.vmem_to_hbm [thread:$0]  %s200, 256, %s5, [#allocation5], 128, 128, 8
    $region41: #{tpu_custom_call.1} parent=1 // pred_fallthru
      _
    // Predicated region
    $region42: #{tpu_custom_call.1} parent=1 // pred_check
      _
    $region43: #{tpu_custom_call.1} parent=1 // pred_check_branch
      %207 = sbr.rel (0) target = $region45
    $region44: #{tpu_custom_call.1} parent=1 // pred_region
      %208 = dma.done [#allocation5], 256
    $region45: #{tpu_custom_call.1} parent=1 // pred_fallthru
      _
    %209 = vsyncpa [#allocation4], 1
    %210 = vsyncpa [#allocation7], 1
    %211 = vsyncpa [#allocation5], 1

</llo_original>
